<compile_context>
chip_gen: v6e
topology: v6e:2x2x1
jax: 0.10.0
libtpu: 0.0.40
codegen_flags: <defaults>
</compile_context>

<pallas_src>
import functools

import jax
import jax.numpy as jnp
from jax.experimental import pallas as pl
from jax.experimental.pallas import tpu as pltpu


def _round_up(n: int, m: int) -> int:
    return ((n + m - 1) // m) * m


def _linear_kernel(x_ref, w_ref, b_ref, o_ref):
    # x_ref: [tB, Hp]  (per-step batch tile, double-buffered)
    # w_ref: [Hp, Lp]  (VMEM-resident across all grid steps)
    # b_ref: [1,  Lp]  f32 (VMEM-resident)
    # o_ref: [tB, Lp]  lane-dense output tile
    acc = jnp.dot(x_ref[...], w_ref[...], preferred_element_type=jnp.float32)
    o_ref[...] = (acc + b_ref[...]).astype(o_ref.dtype)


@functools.partial(jax.jit, static_argnames=("block_b",))
def explainable_output(x, weight, bias, *, block_b: int = 512):
    """y = x @ weight + bias, tiled over the batch dimension.

    x:      [B, H]  (f32 or bf16)
    weight: [H, L]  (PyTorch nn.Linear weight, pre-transposed)
    bias:   [L]
    returns [B, L]  in x.dtype
    """
    B, H = x.shape
    H2, L = weight.shape
    assert H == H2, "x / weight contraction-dim mismatch"

    # --- padding for lane-dense stores and MXU-aligned contraction ----------
    Lp = _round_up(L, 128)            # output lane axis -> full 128-lane vregs
    Hp = _round_up(H, 128)            # contraction axis -> aligned MXU tile

    # Batch tile: multiple of 8 sublanes, capped at block_b rows per grid step.
    tB = min(block_b, _round_up(B, 8))
    Bp = _round_up(B, tB)

    # Zero-pad in the wrapper (fused by XLA under jit); padded K-columns and
    # padded rows contribute exact zeros, padded L-columns are sliced off.
    xp = x if (Bp == B and Hp == H) else jnp.pad(x, ((0, Bp - B), (0, Hp - H)))
    wp = weight if (Hp == H and Lp == L) else jnp.pad(
        weight, ((0, Hp - H), (0, Lp - L)))
    b32 = bias.astype(jnp.float32)
    bp = (b32 if Lp == L else jnp.pad(b32, (0, Lp - L))).reshape(1, Lp)

    grid = (Bp // tB,)

    out = pl.pallas_call(
        _linear_kernel,
        out_shape=jax.ShapeDtypeStruct((Bp, Lp), x.dtype),
        grid=grid,
        in_specs=[
            # x: new batch tile each step (double-buffered by the pipeline).
            pl.BlockSpec((tB, Hp), lambda i: (i, 0)),
            # weight / bias: same block every step -> stay resident in VMEM.
            pl.BlockSpec((Hp, Lp), lambda i: (0, 0)),
            pl.BlockSpec((1, Lp), lambda i: (0, 0)),
        ],
        out_specs=pl.BlockSpec((tB, Lp), lambda i: (i, 0)),
        compiler_params=pltpu.CompilerParams(
            dimension_semantics=("parallel",),
        ),
    )(xp, wp, bp)

    return out[:B, :L]


def _reference(x, weight, bias):
    return (x.astype(jnp.float32) @ weight.astype(jnp.float32)
            + bias.astype(jnp.float32)[None, :]).astype(x.dtype)


if __name__ == "__main__":
    # Small, module-consistent shapes: batch=8, hidden=32, num_labels=3.
    B, H, L = 8, 32, 3

    key = jax.random.PRNGKey(0)
    kx, kw, kb = jax.random.split(key, 3)

    x = jax.random.normal(kx, (B, H), dtype=jnp.float32)

    # Deterministic nn.Linear-style init (uniform in +-1/sqrt(H)).
    bound = 1.0 / (H ** 0.5)
    # PyTorch stores weight as [L, H]; we keep the transposed [H, L] layout.
    weight = jax.random.uniform(kw, (H, L), dtype=jnp.float32,
                                minval=-bound, maxval=bound)
    bias = jax.random.uniform(kb, (L,), dtype=jnp.float32,
                              minval=-bound, maxval=bound)

    y = explainable_output(x, weight, bias)
    y = jax.block_until_ready(y)

    y_ref = _reference(x, weight, bias)
    assert y.shape == (B, L)
    assert jnp.allclose(y, y_ref, atol=1e-5, rtol=1e-5), "mismatch vs reference"

    print("KERNEL_OK")
</pallas_src>

<mosaic_0001>
module attributes {stable_mosaic.version = 11 : i64} {
  func.func @_linear_kernel(%arg0: i32, %arg1: memref<8x128xf32, #tpu.memory_space<vmem>>, %arg2: memref<128x128xf32, #tpu.memory_space<vmem>>, %arg3: memref<1x128xf32, #tpu.memory_space<vmem>>, %arg4: memref<8x128xf32, #tpu.memory_space<vmem>>) attributes {dimension_semantics = [#tpu.dimension_semantics<parallel>], iteration_bounds = array<i64: 1>, scalar_prefetch = 0 : i64, scratch_operands = 0 : i64, tpu.core_type = #tpu.core_type<tc>, window_params = [{transform_indices = @transform_0, window_bounds = array<i64: 8, 128>}, {pipeline_mode = #tpu.pipeline_mode<synchronous>, transform_indices = @transform_1, window_bounds = array<i64: 128, 128>}, {pipeline_mode = #tpu.pipeline_mode<synchronous>, transform_indices = @transform_2, window_bounds = array<i64: 1, 128>}, {transform_indices = @transform_3, window_bounds = array<i64: 8, 128>}]} {
    %c0 = arith.constant 0 : index
    %c0_0 = arith.constant 0 : index
    %0 = vector.load %arg1[%c0, %c0_0] : memref<8x128xf32, #tpu.memory_space<vmem>>, vector<8x128xf32>
    %c0_1 = arith.constant 0 : index
    %c0_2 = arith.constant 0 : index
    %1 = vector.load %arg2[%c0_1, %c0_2] : memref<128x128xf32, #tpu.memory_space<vmem>>, vector<128x128xf32>
    %cst = arith.constant dense<0.000000e+00> : vector<8x128xf32>
    %2 = tpu.matmul %0, %1, %cst {dimension_numbers = #tpu.dot_dimension_numbers<[1], [0], [0], [1], [0, 0, 1, 1], [], []>} : vector<8x128xf32>, vector<128x128xf32>, vector<8x128xf32> -> vector<8x128xf32>
    %c0_3 = arith.constant 0 : index
    %c0_4 = arith.constant 0 : index
    %3 = vector.load %arg3[%c0_3, %c0_4] : memref<1x128xf32, #tpu.memory_space<vmem>>, vector<1x128xf32>
    %4 = vector.broadcast %3 : vector<1x128xf32> to vector<8x128xf32>
    %5 = arith.addf %2, %4 : vector<8x128xf32>
    %c0_5 = arith.constant 0 : index
    %c0_6 = arith.constant 0 : index
    %6 = vector.load %arg4[%c0_5, %c0_6] : memref<8x128xf32, #tpu.memory_space<vmem>>, vector<8x128xf32>
    tpu.vector_store %arg4[%c0_5, %c0_6], %5 {strides = array<i32>} : memref<8x128xf32, #tpu.memory_space<vmem>>, vector<8x128xf32>,
    return
  }
  func.func @transform_0(%arg0: i32) -> (i32, i32) {
    %c0_i32 = arith.constant 0 : i32
    %c0_i32_0 = arith.constant 0 : i32
    return %arg0, %c0_i32 : i32, i32
  }
  func.func @transform_1(%arg0: i32) -> (i32, i32) {
    %c0_i32 = arith.constant 0 : i32
    %c0_i32_0 = arith.constant 0 : i32
    %c0_i32_1 = arith.constant 0 : i32
    return %c0_i32, %c0_i32_0 : i32, i32
  }
  func.func @transform_2(%arg0: i32) -> (i32, i32) {
    %c0_i32 = arith.constant 0 : i32
    %c0_i32_0 = arith.constant 0 : i32
    %c0_i32_1 = arith.constant 0 : i32
    return %c0_i32, %c0_i32_0 : i32, i32
  }
  func.func @transform_3(%arg0: i32) -> (i32, i32) {
    %c0_i32 = arith.constant 0 : i32
    %c0_i32_0 = arith.constant 0 : i32
    return %arg0, %c0_i32 : i32, i32
  }
}

</mosaic_0001>

<llo_original>
// kernel: explainable_output.1
$region0: #{explainable_output.1}
  #allocation0 [shape = 'u32[]', space=smem, size = 0x4, offset = 0x4, fixed_abs, tag = 'smem constant byte address 0x4 - core index']
  #allocation1 [shape = 'u32[144,128]{1,0:T(1,128)}', space=vmem, size = 0x12000, scoped, tag = 'internal scratch']
  %s0 = inlined_call_operand.vmem [shape: f32[8,128], index: 0, kind: input, shape index: {}]
  %s1 = inlined_call_operand.vmem [shape: f32[128,128], index: 1, kind: input, shape index: {}]
  %s2 = inlined_call_operand.vmem [shape: f32[1,128], index: 2, kind: input, shape index: {}]
  %s3 = inlined_call_operand.vmem [shape: f32[8,128], index: 3, kind: output, shape index: {}]
  %s4 = sld [smem:[#allocation0]]
  $region22: #{explainable_output.1} parent=0
    _
  %s6 = ssub.s32 1, %s4
  %s7 = scalar_select 0, %s6, %s4
  // Predicated region
  $region2: #{explainable_output.1} parent=0 // pred_check
    _
  $region3: #{explainable_output.1} parent=0 // pred_check_branch
    %9 = sbr.rel (0) target = $region5
  $region4: #{explainable_output.1} parent=0 // pred_region
    _
  $region5: #{explainable_output.1} parent=0 // pred_fallthru
    _
  // Predicated region
  $region6: #{explainable_output.1} parent=0 // pred_check
    _
  $region7: #{explainable_output.1} parent=0 // pred_check_branch
    %11 = sbr.rel (0) target = $region9
  $region8: #{explainable_output.1} parent=0 // pred_region
    _
  $region9: #{explainable_output.1} parent=0 // pred_fallthru
    _
  // Predicated region
  $region10: #{explainable_output.1} parent=0 // pred_check
    _
  $region11: #{explainable_output.1} parent=0 // pred_check_branch
    %13 = sbr.rel (0) target = $region13
  $region12: #{explainable_output.1} parent=0 // pred_region
    _
  $region13: #{explainable_output.1} parent=0 // pred_fallthru
    _
  %v14 = vld [vmem:[%s0] sm:$0xff]
  %v15 = vld [vmem:[%s1] sm:$0xff]
  %v16 = vld [vmem:[%s1 + $0x8] sm:$0xff]
  %v17 = vld [vmem:[%s1 + $0x10] sm:$0xff]
  %v18 = vld [vmem:[%s1 + $0x18] sm:$0xff]
  %v19 = vld [vmem:[%s1 + $0x20] sm:$0xff]
  %v20 = vld [vmem:[%s1 + $0x28] sm:$0xff]
  %v21 = vld [vmem:[%s1 + $0x30] sm:$0xff]
  %v22 = vld [vmem:[%s1 + $0x38] sm:$0xff]
  %v23 = vld [vmem:[%s1 + $0x40] sm:$0xff]
  %v24 = vld [vmem:[%s1 + $0x48] sm:$0xff]
  %v25 = vld [vmem:[%s1 + $0x50] sm:$0xff]
  %v26 = vld [vmem:[%s1 + $0x58] sm:$0xff]
  %v27 = vld [vmem:[%s1 + $0x60] sm:$0xff]
  %v28 = vld [vmem:[%s1 + $0x68] sm:$0xff]
  %v29 = vld [vmem:[%s1 + $0x70] sm:$0xff]
  %v30 = vld [vmem:[%s1 + $0x78] sm:$0xff]
  %v31 = vld [vmem:[%s2] sm:$0x1]
  %v33 = vlaneseq
  %v34 = vshrl.u32 %v33, 7
  %v35 = vsub.s32 0, %v34
  %v36 = vrot.slane %v31, %v35
  %38 = vmatprep.subr.mxu0 0.0
  %39 = vmatpush1.msra.mxu0 %v30
  %40 = vmatprep.subr.mxu0 0.0
  %41 = vmatpush1.msra.mxu0 %v29
  %42 = vmatprep.subr.mxu0 0.0
  %43 = vmatpush1.msra.mxu0 %v28
  %44 = vmatprep.subr.mxu0 0.0
  %45 = vmatpush1.msra.mxu0 %v27
  %46 = vmatprep.subr.mxu0 0.0
  %47 = vmatpush1.msra.mxu0 %v26
  %48 = vmatprep.subr.mxu0 0.0
  %49 = vmatpush1.msra.mxu0 %v25
  %50 = vmatprep.subr.mxu0 0.0
  %51 = vmatpush1.msra.mxu0 %v24
  %52 = vmatprep.subr.mxu0 0.0
  %53 = vmatpush1.msra.mxu0 %v23
  %54 = vmatprep.subr.mxu0 0.0
  %55 = vmatpush1.msra.mxu0 %v22
  %56 = vmatprep.subr.mxu0 0.0
  %57 = vmatpush1.msra.mxu0 %v21
  %58 = vmatprep.subr.mxu0 0.0
  %59 = vmatpush1.msra.mxu0 %v20
  %60 = vmatprep.subr.mxu0 0.0
  %61 = vmatpush1.msra.mxu0 %v19
  %62 = vmatprep.subr.mxu0 0.0
  %63 = vmatpush1.msra.mxu0 %v18
  %64 = vmatprep.subr.mxu0 0.0
  %65 = vmatpush1.msra.mxu0 %v17
  %66 = vmatprep.subr.mxu0 0.0
  %67 = vmatpush1.msra.mxu0 %v16
  %68 = vmatprep.subr.mxu0 0.0
  %69 = vmatpush1.msra.mxu0 %v15
  %70 = vmatprep.subr.mxu0 0.0
  %71 = vmatpush2.msra.mxu0 0.0
  %72 = vmatprep.subr.mxu0 0.0
  %73 = vmatpush2.msra.mxu0 0.0
  %74 = vmatprep.subr.mxu0 0.0
  %75 = vmatpush2.msra.mxu0 0.0
  %76 = vmatprep.subr.mxu0 0.0
  %77 = vmatpush2.msra.mxu0 0.0
  %78 = vmatprep.subr.mxu0 0.0
  %79 = vmatpush2.msra.mxu0 0.0
  %80 = vmatprep.subr.mxu0 0.0
  %81 = vmatpush2.msra.mxu0 0.0
  %82 = vmatprep.subr.mxu0 0.0
  %83 = vmatpush2.msra.mxu0 0.0
  %84 = vmatprep.subr.mxu0 0.0
  %85 = vmatpush2.msra.mxu0 0.0
  %86 = vmatprep.subr.mxu0 0.0
  %87 = vmatpush2.msra.mxu0 0.0
  %88 = vmatprep.subr.mxu0 0.0
  %89 = vmatpush2.msra.mxu0 0.0
  %90 = vmatprep.subr.mxu0 0.0
  %91 = vmatpush2.msra.mxu0 0.0
  %92 = vmatprep.subr.mxu0 0.0
  %93 = vmatpush2.msra.mxu0 0.0
  %94 = vmatprep.subr.mxu0 0.0
  %95 = vmatpush2.msra.mxu0 0.0
  %96 = vmatprep.subr.mxu0 0.0
  %97 = vmatpush2.msra.mxu0 0.0
  %98 = vmatprep.subr.mxu0 0.0
  %99 = vmatpush2.msra.mxu0 0.0
  %100 = vmatprep.subr.mxu0 0.0
  %101 = vmatpush2.msra.mxu0 0.0
  %102 = vmatprep.mubr.f32.mxu0 0.0
  %103 = vmatmul.mubr.f32.gmra.mxu0 %v14
  %v104 = vpop.f32.mrf.mxu0
  %v105 = vadd.f32 %v36, %v104
  %v106 = vpop.f32.mrf.mxu0
  %107 = vdwg.mxu0
  %108 = vst [vmem:[%s3] sm:$0xff] %v105
  // Predicated region
  $region14: #{explainable_output.1} parent=0 // pred_check
    _
  $region15: #{explainable_output.1} parent=0 // pred_check_branch
    %110 = sbr.rel (0) target = $region17
  $region16: #{explainable_output.1} parent=0 // pred_region
    _
  $region17: #{explainable_output.1} parent=0 // pred_fallthru
    _
  // Predicated region
  $region18: #{explainable_output.1} parent=0 // pred_check
    _
  $region19: #{explainable_output.1} parent=0 // pred_check_branch
    %112 = sbr.rel (0) target = $region21
  $region20: #{explainable_output.1} parent=0 // pred_region
    _
  $region21: #{explainable_output.1} parent=0 // pred_fallthru
    _

</llo_original>
